<compile_context>
chip_gen: v5e
topology: v5e:2x2
jax: 0.10.0
libtpu: 0.0.40
codegen_flags: <defaults>
</compile_context>

<pallas_src>
import jax
import jax.numpy as jnp
import numpy as np
from jax import lax
from jax.experimental import pallas as pl
from jax.experimental.pallas import tpu as pltpu

NEG_SLOPE = 0.01  # nn.LeakyReLU() default negative_slope


def _round_up(x, m):
    return (x + m - 1) // m * m


def _make_kernel(layers, bias_col):
    """Build the MLP kernel. `layers` is a tuple of static (row_off, out, in)."""
    n_layers = len(layers)

    def kernel(x_ref, slab_ref, out_ref):
        # x_ref is the natural-layout [TILE_B, F] tile.  The first layer is a
        # trans_b contraction w[out,F] . x[TILE_B,F]^T, which lands the result
        # directly in the batch-on-lanes [C, TILE_B] layout; every later layer
        # stays lane-dense.  Slicing K to 0:in_d keeps the VMEM tile's
        # lane/sublane padding out of the contraction.
        r0, out_d, in_d = layers[0]
        w = slab_ref[r0:r0 + out_d, 0:in_d]                   # [out, F]
        b = slab_ref[r0:r0 + out_d, bias_col:bias_col + 1]    # [out, 1] lane bcast
        h = lax.dot_general(w, x_ref[...],
                            dimension_numbers=(((1,), (1,)), ((), ())),
                            preferred_element_type=jnp.float32) + b
        h = jnp.maximum(h, NEG_SLOPE * h)                     # LeakyReLU (single vmax)

        for li in range(1, n_layers):
            r0, out_d, in_d = layers[li]
            w = slab_ref[r0:r0 + out_d, 0:in_d]               # [out, in]
            b = slab_ref[r0:r0 + out_d, bias_col:bias_col + 1]
            h = jnp.dot(w, h, preferred_element_type=jnp.float32) + b
            if li < n_layers - 1:
                h = jnp.maximum(h, NEG_SLOPE * h)

        # Last layer is (1, C_mid) @ (C_mid, TILE_B): lane-dense (1, TILE_B) store.
        out_ref[...] = h.astype(out_ref.dtype)

    return kernel


def pack_params(params):
    """Pack all weights+biases (PyTorch layout W:[out,in], b:[out]) into one
    f32 slab so the kernel receives a single resident VMEM input.

    Weight i occupies rows [r0, r0+out), cols [0, in); its bias sits in the
    same rows at column `bias_col`.  Row offsets are 8-aligned (sublanes),
    slab width is padded to a multiple of 128 (lanes).
    """
    outs = [int(w.shape[0]) for w, _ in params]
    ins = [int(w.shape[1]) for w, _ in params]
    k_max = max(ins)
    bias_col = k_max
    width = _round_up(k_max + 1, 128)

    layers = []
    r = 0
    for o, i in zip(outs, ins):
        layers.append((r, o, i))
        r += _round_up(o, 8)
    rows = _round_up(max(r, 8), 8)

    slab = np.zeros((rows, width), np.float32)
    for (r0, o, i), (w, b) in zip(layers, params):
        slab[r0:r0 + o, :i] = np.asarray(w, np.float32)
        slab[r0:r0 + o, bias_col] = np.asarray(b, np.float32)
    return jnp.asarray(slab), tuple(layers), bias_col


def _pick_tile_b(B, layers, max_tile_b=8192, act_budget_bytes=24 << 20):
    """Largest 128-multiple batch tile that fits an activation-VMEM budget,
    capped so the grid keeps >= 2 steps whenever the batch allows it (v7x
    megacore; harmless no-op on v5e/v6e)."""
    max_dim = _round_up(max(o for _, o, _ in layers), 8)
    # Per-batch-lane f32 bytes: double-buffered x tile (F lane-padded to 128),
    # double-buffered (1, tile_b) out tile (sublane-padded to 8), plus ~3 live
    # [C, tile_b] activation / accumulator planes inside the kernel body.
    per_col_bytes = 4 * (2 * 128 + 2 * 8 + 3 * max_dim)
    vmem_cap = max(128, (act_budget_bytes // per_col_bytes) // 128 * 128)
    tile_b = max(128, min(_round_up(B, 128), max_tile_b, vmem_cap))
    if _round_up(B, 128) >= 256:
        tile_b = min(tile_b, max(128, _round_up((B + 1) // 2, 128)))
    return tile_b


def disc_joint_path_forward(x, params, max_tile_b=8192, squeeze_output=False):
    """x: [B, num_joints*3].  params: list of (W[out,in], b[out]) PyTorch layout.

    Returns [B, 1] (matching the nn.Module); pass squeeze_output=True to get
    the lane-dense [B] vector and skip the final lane->sublane relayout copy.
    """
    B, F = x.shape
    slab, layers, bias_col = pack_params(params)
    assert F == layers[0][2], "x feature dim must match layer_1 fan-in"

    tile_b = _pick_tile_b(B, layers, max_tile_b)
    B_pad = _round_up(B, tile_b)

    # Natural [B, F] streaming: only a cheap zero-pad of the batch tail
    # (no wrapper-side transpose / full-size zeros / dynamic-update-slice).
    x_p = x.astype(jnp.float32)
    if B_pad != B:
        x_p = jnp.pad(x_p, ((0, B_pad - B), (0, 0)))

    kernel = _make_kernel(layers, bias_col)
    grid = (B_pad // tile_b,)

    # Explicit VMEM budget so v5e's 16 MiB default scoped limit never throttles
    # pipelining at large tiles (slab still double-buffered by default; the
    # pl.Buffered(1) tidy-up is skipped as its saving is negligible).
    slab_bytes = slab.size * 4
    max_dim = _round_up(max(o for _, o, _ in layers), 8)
    vmem_est = (2 * slab_bytes + 2 * tile_b * 128 * 4 + 2 * 8 * tile_b * 4
                + 3 * max_dim * tile_b * 4)
    vmem_limit = int(min(56 << 20, max(32 << 20, vmem_est + (8 << 20))))

    flops = int(2 * B_pad * sum(o * i for _, o, i in layers))
    bytes_accessed = int(x_p.size * 4 + slab.size * 4 + B_pad * 4)

    yT = pl.pallas_call(
        kernel,
        out_shape=jax.ShapeDtypeStruct((1, B_pad), jnp.float32),
        grid=grid,
        in_specs=[
            pl.BlockSpec((tile_b, F), lambda i: (i, 0)),        # streamed activations
            pl.BlockSpec(slab.shape, lambda i: (0, 0)),         # resident packed params
        ],
        out_specs=pl.BlockSpec((1, tile_b), lambda i: (0, i)),  # lane-dense output row
        compiler_params=pltpu.CompilerParams(
            dimension_semantics=("parallel",),                  # v7x: 2 TCs share batch
            vmem_limit_bytes=vmem_limit),
        cost_estimate=pl.CostEstimate(
            flops=flops, transcendentals=0, bytes_accessed=bytes_accessed),
    )(x_p, slab)

    y_row = yT[0, :B]                  # lane-dense (B,)
    if squeeze_output:
        return y_row
    return y_row.reshape(B, 1)         # match nn.Module output shape [B, 1]


def init_params(key, num_joints=1, channel=32, channel_mid=64):
    """PyTorch-layout params mimicking nn.Linear default init (U[-k,k], k=1/sqrt(fan_in))."""
    dims = [(channel, num_joints * 3),
            (channel, channel),
            (channel, channel),
            (channel_mid, channel),
            (1, channel_mid)]
    params = []
    for (fan_out, fan_in) in dims:
        key, kw, kb = jax.random.split(key, 3)
        bound = 1.0 / np.sqrt(fan_in)
        w = jax.random.uniform(kw, (fan_out, fan_in), jnp.float32, -bound, bound)
        b = jax.random.uniform(kb, (fan_out,), jnp.float32, -bound, bound)
        params.append((w, b))
    return params


def reference_forward(x, params):
    h = x
    for i, (w, b) in enumerate(params):
        h = h @ w.T + b
        if i < len(params) - 1:
            h = jnp.where(h > 0, h, NEG_SLOPE * h)
    return h


if __name__ == "__main__":
    key = jax.random.PRNGKey(0)
    k_x, k_x2, k_p = jax.random.split(key, 3)

    num_joints = 1
    channel = 32
    channel_mid = 64

    params = init_params(k_p, num_joints, channel, channel_mid)

    # Small single-tile batch.
    x = jax.random.normal(k_x, (8, num_joints * 3), jnp.float32)
    y = jax.block_until_ready(disc_joint_path_forward(x, params))
    y_ref = reference_forward(x, params)
    np.testing.assert_allclose(np.asarray(y), np.asarray(y_ref), rtol=2e-5, atol=2e-5)

    # Multi-grid-step batch with a padded tail (exercises the 2-step grid path).
    x2 = jax.random.normal(k_x2, (300, num_joints * 3), jnp.float32)
    y2 = jax.block_until_ready(disc_joint_path_forward(x2, params))
    y2_ref = reference_forward(x2, params)
    np.testing.assert_allclose(np.asarray(y2), np.asarray(y2_ref), rtol=2e-5, atol=2e-5)

    print("KERNEL_OK")
</pallas_src>

<mosaic_0001>
module attributes {stable_mosaic.version = 11 : i64} {
  func.func @kernel(%arg0: i32, %arg1: memref<128x3xf32, #tpu.memory_space<vmem>>, %arg2: memref<168x128xf32, #tpu.memory_space<vmem>>, %arg3: memref<1x128xf32, #tpu.memory_space<vmem>>) attributes {dimension_semantics = [#tpu.dimension_semantics<parallel>], iteration_bounds = array<i64: 1>, scalar_prefetch = 0 : i64, scratch_operands = 0 : i64, tpu.core_type = #tpu.core_type<tc>, window_params = [{transform_indices = @transform_0, window_bounds = array<i64: 128, 3>}, {pipeline_mode = #tpu.pipeline_mode<synchronous>, transform_indices = @transform_1, window_bounds = array<i64: 168, 128>}, {transform_indices = @transform_2, window_bounds = array<i64: 1, 128>}]} {
    %c0 = arith.constant 0 : index
    %c0_0 = arith.constant 0 : index
    %0 = vector.load %arg2[%c0, %c0_0] : memref<168x128xf32, #tpu.memory_space<vmem>>, vector<32x3xf32>
    %c0_1 = arith.constant 0 : index
    %c64 = arith.constant 64 : index
    %1 = vector.load %arg2[%c0_1, %c64] : memref<168x128xf32, #tpu.memory_space<vmem>>, vector<32x1xf32>
    %c0_2 = arith.constant 0 : index
    %c0_3 = arith.constant 0 : index
    %2 = vector.load %arg1[%c0_2, %c0_3] : memref<128x3xf32, #tpu.memory_space<vmem>>, vector<128x3xf32>
    %cst = arith.constant dense<0.000000e+00> : vector<32x128xf32>
    %3 = tpu.matmul %0, %2, %cst {dimension_numbers = #tpu.dot_dimension_numbers<[1], [1], [0], [0], [0, 0, 1, 0], [], []>} : vector<32x3xf32>, vector<128x3xf32>, vector<32x128xf32> -> vector<32x128xf32>
    %4 = vector.broadcast %1 : vector<32x1xf32> to vector<32x128xf32>
    %5 = arith.addf %3, %4 : vector<32x128xf32>
    %cst_4 = arith.constant 0.00999999977 : f32
    %6 = vector.broadcast %cst_4 : f32 to vector<32x128xf32>
    %7 = arith.mulf %6, %5 : vector<32x128xf32>
    %8 = arith.maximumf %5, %7 : vector<32x128xf32>
    %c32 = arith.constant 32 : index
    %c0_5 = arith.constant 0 : index
    %9 = vector.load %arg2[%c32, %c0_5] : memref<168x128xf32, #tpu.memory_space<vmem>>, vector<32x32xf32>
    %c32_6 = arith.constant 32 : index
    %c64_7 = arith.constant 64 : index
    %10 = vector.load %arg2[%c32_6, %c64_7] : memref<168x128xf32, #tpu.memory_space<vmem>>, vector<32x1xf32>
    %cst_8 = arith.constant dense<0.000000e+00> : vector<32x128xf32>
    %11 = tpu.matmul %9, %8, %cst_8 {dimension_numbers = #tpu.dot_dimension_numbers<[1], [0], [0], [1], [0, 0, 1, 1], [], []>} : vector<32x32xf32>, vector<32x128xf32>, vector<32x128xf32> -> vector<32x128xf32>
    %12 = vector.broadcast %10 : vector<32x1xf32> to vector<32x128xf32>
    %13 = arith.addf %11, %12 : vector<32x128xf32>
    %cst_9 = arith.constant 0.00999999977 : f32
    %14 = vector.broadcast %cst_9 : f32 to vector<32x128xf32>
    %15 = arith.mulf %14, %13 : vector<32x128xf32>
    %16 = arith.maximumf %13, %15 : vector<32x128xf32>
    %c64_10 = arith.constant 64 : index
    %c0_11 = arith.constant 0 : index
    %17 = vector.load %arg2[%c64_10, %c0_11] : memref<168x128xf32, #tpu.memory_space<vmem>>, vector<32x32xf32>
    %c64_12 = arith.constant 64 : index
    %c64_13 = arith.constant 64 : index
    %18 = vector.load %arg2[%c64_12, %c64_13] : memref<168x128xf32, #tpu.memory_space<vmem>>, vector<32x1xf32>
    %cst_14 = arith.constant dense<0.000000e+00> : vector<32x128xf32>
    %19 = tpu.matmul %17, %16, %cst_14 {dimension_numbers = #tpu.dot_dimension_numbers<[1], [0], [0], [1], [0, 0, 1, 1], [], []>} : vector<32x32xf32>, vector<32x128xf32>, vector<32x128xf32> -> vector<32x128xf32>
    %20 = vector.broadcast %18 : vector<32x1xf32> to vector<32x128xf32>
    %21 = arith.addf %19, %20 : vector<32x128xf32>
    %cst_15 = arith.constant 0.00999999977 : f32
    %22 = vector.broadcast %cst_15 : f32 to vector<32x128xf32>
    %23 = arith.mulf %22, %21 : vector<32x128xf32>
    %24 = arith.maximumf %21, %23 : vector<32x128xf32>
    %c96 = arith.constant 96 : index
    %c0_16 = arith.constant 0 : index
    %25 = vector.load %arg2[%c96, %c0_16] : memref<168x128xf32, #tpu.memory_space<vmem>>, vector<64x32xf32>
    %c96_17 = arith.constant 96 : index
    %c64_18 = arith.constant 64 : index
    %26 = vector.load %arg2[%c96_17, %c64_18] : memref<168x128xf32, #tpu.memory_space<vmem>>, vector<64x1xf32>
    %cst_19 = arith.constant dense<0.000000e+00> : vector<64x128xf32>
    %27 = tpu.matmul %25, %24, %cst_19 {dimension_numbers = #tpu.dot_dimension_numbers<[1], [0], [0], [1], [0, 0, 1, 1], [], []>} : vector<64x32xf32>, vector<32x128xf32>, vector<64x128xf32> -> vector<64x128xf32>
    %28 = vector.broadcast %26 : vector<64x1xf32> to vector<64x128xf32>
    %29 = arith.addf %27, %28 : vector<64x128xf32>
    %cst_20 = arith.constant 0.00999999977 : f32
    %30 = vector.broadcast %cst_20 : f32 to vector<64x128xf32>
    %31 = arith.mulf %30, %29 : vector<64x128xf32>
    %32 = arith.maximumf %29, %31 : vector<64x128xf32>
    %c160 = arith.constant 160 : index
    %c0_21 = arith.constant 0 : index
    %33 = vector.load %arg2[%c160, %c0_21] : memref<168x128xf32, #tpu.memory_space<vmem>>, vector<1x64xf32>
    %c160_22 = arith.constant 160 : index
    %c64_23 = arith.constant 64 : index
    %34 = vector.load %arg2[%c160_22, %c64_23] : memref<168x128xf32, #tpu.memory_space<vmem>>, vector<1x1xf32>
    %cst_24 = arith.constant dense<0.000000e+00> : vector<1x128xf32>
    %35 = tpu.matmul %33, %32, %cst_24 {dimension_numbers = #tpu.dot_dimension_numbers<[1], [0], [0], [1], [0, 0, 1, 1], [], []>} : vector<1x64xf32>, vector<64x128xf32>, vector<1x128xf32> -> vector<1x128xf32>
    %36 = vector.broadcast %34 : vector<1x1xf32> to vector<1x128xf32>
    %37 = arith.addf %35, %36 : vector<1x128xf32>
    %c0_25 = arith.constant 0 : index
    %c0_26 = arith.constant 0 : index
    %38 = vector.load %arg3[%c0_25, %c0_26] : memref<1x128xf32, #tpu.memory_space<vmem>>, vector<1x128xf32>
    tpu.vector_store %arg3[%c0_25, %c0_26], %37 {strides = array<i32>} : memref<1x128xf32, #tpu.memory_space<vmem>>, vector<1x128xf32>,
    return
  }
  func.func @transform_0(%arg0: i32) -> (i32, i32) {
    %c0_i32 = arith.constant 0 : i32
    %c0_i32_0 = arith.constant 0 : i32
    return %arg0, %c0_i32 : i32, i32
  }
  func.func @transform_1(%arg0: i32) -> (i32, i32) {
    %c0_i32 = arith.constant 0 : i32
    %c0_i32_0 = arith.constant 0 : i32
    %c0_i32_1 = arith.constant 0 : i32
    return %c0_i32, %c0_i32_0 : i32, i32
  }
  func.func @transform_2(%arg0: i32) -> (i32, i32) {
    %c0_i32 = arith.constant 0 : i32
    %c0_i32_0 = arith.constant 0 : i32
    return %c0_i32, %arg0 : i32, i32
  }
}

</mosaic_0001>

<llo_original>
// kernel: tpu_custom_call.1
$region0: #{tpu_custom_call.1}
  #allocation0 [shape = 'u32[]', space=smem, size = 0x4, offset = 0x4, fixed_abs, tag = 'smem constant byte address 0x4 - core index']
  #allocation1 [shape = 'u32[72,128]{1,0:T(1,128)}', space=vmem, size = 0x9000, scoped, tag = 'internal scratch']
  %s0 = inlined_call_operand.vmem [shape: f32[128,3], index: 0, kind: input, shape index: {}]
  %s1 = inlined_call_operand.hbm [shape: f32[168,128], index: 1, kind: input, shape index: {}]
  %s2 = inlined_call_operand.hbm [shape: f32[1,128], index: 2, kind: output, shape index: {}]
  %s3 = sld [smem:[#allocation0]]
  $region22: #{tpu_custom_call.1} parent=0
    _
  %s5 = ssub.s32 1, %s3
  %s6 = scalar_select 0, %s5, %s3
  $region1: #{tpu_custom_call.1} parent=0
    #allocation2 [shape = 'u8[86016]{0}', space=vmem, size = 0x15000, scoped, tag = 'input window, operand 1, single buffered']
    #allocation3 [shape = 's32[1]{0}', space=sflag, size = 0x4, scoped, tag = 'scoped memory for tpu_custom_call.1']
    #allocation4 [shape = 's32[1]{0}', space=sflag, size = 0x4, scoped, tag = 'scoped memory for tpu_custom_call.1']
    #allocation5 [shape = 'u8[512]{0}', space=vmem, size = 0x400, scoped, tag = 'output window, operand 0, single buffered']
    %7 = vsyncpa [#allocation3], 0
    %8 = vsyncpa [#allocation4], 0
    // Predicated region
    $region2: #{tpu_custom_call.1} parent=1 // pred_check
      _
    $region3: #{tpu_custom_call.1} parent=1 // pred_check_branch
      %10 = sbr.rel (0) target = $region5
    $region4: #{tpu_custom_call.1} parent=1 // pred_region
      _
    $region5: #{tpu_custom_call.1} parent=1 // pred_fallthru
      _
    // Predicated region
    $region6: #{tpu_custom_call.1} parent=1 // pred_check
      _
    $region7: #{tpu_custom_call.1} parent=1 // pred_check_branch
      %12 = sbr.rel (0) target = $region9
    $region8: #{tpu_custom_call.1} parent=1 // pred_region
      %14 = vsyncadd [#allocation3], 0
      %s15 = sshll.u32 %s1, 4
      %s16 = int_to_ptr.hbm [resolvable:$true] %s15
      %s17 = sshll.u32 [#allocation2], 4
      %s18 = int_to_ptr.vmem [resolvable:$true] %s17
      %23 = dma.hbm_to_vmem [thread:$0]  %s16, 2688, %s18, [#allocation3], 128, 128, 8
    $region9: #{tpu_custom_call.1} parent=1 // pred_fallthru
      _
    // Predicated region
    $region10: #{tpu_custom_call.1} parent=1 // pred_check
      _
    $region11: #{tpu_custom_call.1} parent=1 // pred_check_branch
      %25 = sbr.rel (0) target = $region13
    $region12: #{tpu_custom_call.1} parent=1 // pred_region
      %27 = dma.done [#allocation3], 2688
    $region13: #{tpu_custom_call.1} parent=1 // pred_fallthru
      _
    %v28 = vld [vmem:[#allocation2] sm:$0xff]
    %v29 = vld [vmem:[#allocation2 + $0x8] sm:$0xff]
    %v30 = vld [vmem:[#allocation2 + $0x10] sm:$0xff]
    %v31 = vld [vmem:[#allocation2 + $0x18] sm:$0xff]
    %v32 = vld [vmem:[%s0] sm:$0xff]
    %v33 = vld [vmem:[%s0 + $0x8] sm:$0xff]
    %v34 = vld [vmem:[%s0 + $0x10] sm:$0xff]
    %v35 = vld [vmem:[%s0 + $0x18] sm:$0xff]
    %v36 = vld [vmem:[%s0 + $0x20] sm:$0xff]
    %v37 = vld [vmem:[%s0 + $0x28] sm:$0xff]
    %v38 = vld [vmem:[%s0 + $0x30] sm:$0xff]
    %v39 = vld [vmem:[%s0 + $0x38] sm:$0xff]
    %v40 = vld [vmem:[%s0 + $0x40] sm:$0xff]
    %v41 = vld [vmem:[%s0 + $0x48] sm:$0xff]
    %v42 = vld [vmem:[%s0 + $0x50] sm:$0xff]
    %v43 = vld [vmem:[%s0 + $0x58] sm:$0xff]
    %v44 = vld [vmem:[%s0 + $0x60] sm:$0xff]
    %v45 = vld [vmem:[%s0 + $0x68] sm:$0xff]
    %v46 = vld [vmem:[%s0 + $0x70] sm:$0xff]
    %v47 = vld [vmem:[%s0 + $0x78] sm:$0xff]
    %49 = vset.pattern.permute.xlu0 64
    %50 = vperm.xlu0 %49, %v28
    %v51 = vpop.permute.xlu0 %50
    %54 = vset.pattern.permute.xlu0 64
    %55 = vperm.xlu0 %54, %v29
    %v56 = vpop.permute.xlu0 %55
    %59 = vset.pattern.permute.xlu0 64
    %60 = vperm.xlu0 %59, %v30
    %v61 = vpop.permute.xlu0 %60
    %64 = vset.pattern.permute.xlu0 64
    %65 = vperm.xlu0 %64, %v31
    %v66 = vpop.permute.xlu0 %65
    %vm68 = vcmask 23552
    %v69 = vsel %vm68, %v28, 0
    %v71 = vsel %vm68, %v29, 0
    %v73 = vsel %vm68, %v30, 0
    %v75 = vsel %vm68, %v31, 0
    %v78 = vsel %vm68, %v32, 0
    %v81 = vsel %vm68, %v33, 0
    %v84 = vsel %vm68, %v34, 0
    %v87 = vsel %vm68, %v35, 0
    %v90 = vsel %vm68, %v36, 0
    %v93 = vsel %vm68, %v37, 0
    %v96 = vsel %vm68, %v38, 0
    %v99 = vsel %vm68, %v39, 0
    %v102 = vsel %vm68, %v40, 0
    %v105 = vsel %vm68, %v41, 0
    %v108 = vsel %vm68, %v42, 0
    %v111 = vsel %vm68, %v43, 0
    %v114 = vsel %vm68, %v44, 0
    %v117 = vsel %vm68, %v45, 0
    %v120 = vsel %vm68, %v46, 0
    %v123 = vsel %vm68, %v47, 0
    %125 = vmatpush.xpose.msra.mxu0 %v123
    %126 = vmatpush.xpose.msra.mxu0 %v120
    %127 = vmatpush.xpose.msra.mxu0 %v117
    %128 = vmatpush.xpose.msra.mxu0 %v114
    %129 = vmatpush.xpose.msra.mxu0 %v111
    %130 = vmatpush.xpose.msra.mxu0 %v108
    %131 = vmatpush.xpose.msra.mxu0 %v105
    %132 = vmatpush.xpose.msra.mxu0 %v102
    %133 = vmatpush.xpose.msra.mxu0 %v99
    %134 = vmatpush.xpose.msra.mxu0 %v96
    %135 = vmatpush.xpose.msra.mxu0 %v93
    %136 = vmatpush.xpose.msra.mxu0 %v90
    %137 = vmatpush.xpose.msra.mxu0 %v87
    %138 = vmatpush.xpose.msra.mxu0 %v84
    %139 = vmatpush.xpose.msra.mxu0 %v81
    %140 = vmatpush.xpose.msra.mxu0 %v78
    %141 = vmatmul.f32.gmra.mxu0 %v69
    %v142 = vpop.f32.mrf.mxu0
    %v143 = vadd.f32 %v51, %v142
    %144 = vmatmul.f32.gmra.mxu0 %v71
    %v145 = vpop.f32.mrf.mxu0
    %v146 = vadd.f32 %v56, %v145
    %147 = vmatmul.f32.gmra.mxu0 %v73
    %v148 = vpop.f32.mrf.mxu0
    %v149 = vadd.f32 %v61, %v148
    %150 = vmatmul.f32.gmra.mxu0 %v75
    %v151 = vpop.f32.mrf.mxu0
    %v152 = vadd.f32 %v66, %v151
    %153 = vdwg.mxu0
    %v154 = vmul.f32 %v143, 0.01
    %v155 = vmul.f32 %v146, 0.01
    %v156 = vmul.f32 %v149, 0.01
    %v157 = vmul.f32 %v152, 0.01
    %v158 = vmax.f32 %v143, %v154
    %v159 = vmax.f32 %v146, %v155
    %v160 = vmax.f32 %v149, %v156
    %v161 = vmax.f32 %v152, %v157
    %v162 = vld [vmem:[#allocation2 + $0x20] sm:$0xff]
    %v163 = vld [vmem:[#allocation2 + $0x28] sm:$0xff]
    %v164 = vld [vmem:[#allocation2 + $0x30] sm:$0xff]
    %v165 = vld [vmem:[#allocation2 + $0x38] sm:$0xff]
    %167 = vset.pattern.permute.xlu0 64
    %168 = vperm.xlu0 %167, %v162
    %v169 = vpop.permute.xlu0 %168
    %172 = vset.pattern.permute.xlu0 64
    %173 = vperm.xlu0 %172, %v163
    %v174 = vpop.permute.xlu0 %173
    %177 = vset.pattern.permute.xlu0 64
    %178 = vperm.xlu0 %177, %v164
    %v179 = vpop.permute.xlu0 %178
    %182 = vset.pattern.permute.xlu0 64
    %183 = vperm.xlu0 %182, %v165
    %v184 = vpop.permute.xlu0 %183
    %vm186 = vcmask 261120
    %v187 = vsel %vm186, %v162, 0
    %v189 = vsel %vm186, %v163, 0
    %v191 = vsel %vm186, %v164, 0
    %v193 = vsel %vm186, %v165, 0
    %195 = vmatpush.msra.mxu0 0.0
    %196 = vmatpush.msra.mxu0 0.0
    %197 = vmatpush.msra.mxu0 0.0
    %198 = vmatpush.msra.mxu0 0.0
    %199 = vmatpush.msra.mxu0 0.0
    %200 = vmatpush.msra.mxu0 0.0
    %201 = vmatpush.msra.mxu0 0.0
    %202 = vmatpush.msra.mxu0 0.0
    %203 = vmatpush.msra.mxu0 0.0
    %204 = vmatpush.msra.mxu0 0.0
    %205 = vmatpush.msra.mxu0 0.0
    %206 = vmatpush.msra.mxu0 0.0
    %207 = vmatpush.msra.mxu0 %v161
    %208 = vmatpush.msra.mxu0 %v160
    %209 = vmatpush.msra.mxu0 %v159
    %210 = vmatpush.msra.mxu0 %v158
    %211 = vmatmul.f32.gmra.mxu0 %v187
    %v212 = vpop.f32.mrf.mxu0
    %v213 = vadd.f32 %v169, %v212
    %214 = vmatmul.f32.gmra.mxu0 %v189
    %v215 = vpop.f32.mrf.mxu0
    %v216 = vadd.f32 %v174, %v215
    %217 = vmatmul.f32.gmra.mxu0 %v191
    %v218 = vpop.f32.mrf.mxu0
    %v219 = vadd.f32 %v179, %v218
    %220 = vmatmul.f32.gmra.mxu0 %v193
    %v221 = vpop.f32.mrf.mxu0
    %v222 = vadd.f32 %v184, %v221
    %223 = vdwg.mxu0
    %v224 = vmul.f32 %v213, 0.01
    %v225 = vmul.f32 %v216, 0.01
    %v226 = vmul.f32 %v219, 0.01
    %v227 = vmul.f32 %v222, 0.01
    %v228 = vmax.f32 %v213, %v224
    %v229 = vmax.f32 %v216, %v225
    %v230 = vmax.f32 %v219, %v226
    %v231 = vmax.f32 %v222, %v227
    %v232 = vld [vmem:[#allocation2 + $0x40] sm:$0xff]
    %v233 = vld [vmem:[#allocation2 + $0x48] sm:$0xff]
    %v234 = vld [vmem:[#allocation2 + $0x50] sm:$0xff]
    %v235 = vld [vmem:[#allocation2 + $0x58] sm:$0xff]
    %237 = vset.pattern.permute.xlu0 64
    %238 = vperm.xlu0 %237, %v232
    %v239 = vpop.permute.xlu0 %238
    %242 = vset.pattern.permute.xlu0 64
    %243 = vperm.xlu0 %242, %v233
    %v244 = vpop.permute.xlu0 %243
    %247 = vset.pattern.permute.xlu0 64
    %248 = vperm.xlu0 %247, %v234
    %v249 = vpop.permute.xlu0 %248
    %252 = vset.pattern.permute.xlu0 64
    %253 = vperm.xlu0 %252, %v235
    %v254 = vpop.permute.xlu0 %253
    %v256 = vsel %vm186, %v232, 0
    %v258 = vsel %vm186, %v233, 0
    %v260 = vsel %vm186, %v234, 0
    %v262 = vsel %vm186, %v235, 0
    %264 = vmatpush.msra.mxu0 0.0
    %265 = vmatpush.msra.mxu0 0.0
    %266 = vmatpush.msra.mxu0 0.0
    %267 = vmatpush.msra.mxu0 0.0
    %268 = vmatpush.msra.mxu0 0.0
    %269 = vmatpush.msra.mxu0 0.0
    %270 = vmatpush.msra.mxu0 0.0
    %271 = vmatpush.msra.mxu0 0.0
    %272 = vmatpush.msra.mxu0 0.0
    %273 = vmatpush.msra.mxu0 0.0
    %274 = vmatpush.msra.mxu0 0.0
    %275 = vmatpush.msra.mxu0 0.0
    %276 = vmatpush.msra.mxu0 %v231
    %277 = vmatpush.msra.mxu0 %v230
    %278 = vmatpush.msra.mxu0 %v229
    %279 = vmatpush.msra.mxu0 %v228
    %280 = vmatmul.f32.gmra.mxu0 %v256
    %v281 = vpop.f32.mrf.mxu0
    %v282 = vadd.f32 %v239, %v281
    %283 = vmatmul.f32.gmra.mxu0 %v258
    %v284 = vpop.f32.mrf.mxu0
    %v285 = vadd.f32 %v244, %v284
    %286 = vmatmul.f32.gmra.mxu0 %v260
    %v287 = vpop.f32.mrf.mxu0
    %v288 = vadd.f32 %v249, %v287
    %289 = vmatmul.f32.gmra.mxu0 %v262
    %v290 = vpop.f32.mrf.mxu0
    %v291 = vadd.f32 %v254, %v290
    %292 = vdwg.mxu0
    %v293 = vmul.f32 %v282, 0.01
    %v294 = vmul.f32 %v285, 0.01
    %v295 = vmul.f32 %v288, 0.01
    %v296 = vmul.f32 %v291, 0.01
    %v297 = vmax.f32 %v282, %v293
    %v298 = vmax.f32 %v285, %v294
    %v299 = vmax.f32 %v288, %v295
    %v300 = vmax.f32 %v291, %v296
    %v301 = vld [vmem:[#allocation2 + $0x60] sm:$0xff]
    %v302 = vld [vmem:[#allocation2 + $0x68] sm:$0xff]
    %v303 = vld [vmem:[#allocation2 + $0x70] sm:$0xff]
    %v304 = vld [vmem:[#allocation2 + $0x78] sm:$0xff]
    %v305 = vld [vmem:[#allocation2 + $0x80] sm:$0xff]
    %v306 = vld [vmem:[#allocation2 + $0x88] sm:$0xff]
    %v307 = vld [vmem:[#allocation2 + $0x90] sm:$0xff]
    %v308 = vld [vmem:[#allocation2 + $0x98] sm:$0xff]
    %310 = vset.pattern.permute.xlu0 64
    %311 = vperm.xlu0 %310, %v301
    %v312 = vpop.permute.xlu0 %311
    %315 = vset.pattern.permute.xlu0 64
    %316 = vperm.xlu0 %315, %v302
    %v317 = vpop.permute.xlu0 %316
    %320 = vset.pattern.permute.xlu0 64
    %321 = vperm.xlu0 %320, %v303
    %v322 = vpop.permute.xlu0 %321
    %325 = vset.pattern.permute.xlu0 64
    %326 = vperm.xlu0 %325, %v304
    %v327 = vpop.permute.xlu0 %326
    %330 = vset.pattern.permute.xlu0 64
    %331 = vperm.xlu0 %330, %v305
    %v332 = vpop.permute.xlu0 %331
    %335 = vset.pattern.permute.xlu0 64
    %336 = vperm.xlu0 %335, %v306
    %v337 = vpop.permute.xlu0 %336
    %340 = vset.pattern.permute.xlu0 64
    %341 = vperm.xlu0 %340, %v307
    %v342 = vpop.permute.xlu0 %341
    %345 = vset.pattern.permute.xlu0 64
    %346 = vperm.xlu0 %345, %v308
    %v347 = vpop.permute.xlu0 %346
    %v349 = vsel %vm186, %v301, 0
    %v351 = vsel %vm186, %v302, 0
    %v353 = vsel %vm186, %v303, 0
    %v355 = vsel %vm186, %v304, 0
    %v357 = vsel %vm186, %v305, 0
    %v359 = vsel %vm186, %v306, 0
    %v361 = vsel %vm186, %v307, 0
    %v363 = vsel %vm186, %v308, 0
    %365 = vmatpush.msra.mxu0 0.0
    %366 = vmatpush.msra.mxu0 0.0
    %367 = vmatpush.msra.mxu0 0.0
    %368 = vmatpush.msra.mxu0 0.0
    %369 = vmatpush.msra.mxu0 0.0
    %370 = vmatpush.msra.mxu0 0.0
    %371 = vmatpush.msra.mxu0 0.0
    %372 = vmatpush.msra.mxu0 0.0
    %373 = vmatpush.msra.mxu0 0.0
    %374 = vmatpush.msra.mxu0 0.0
    %375 = vmatpush.msra.mxu0 0.0
    %376 = vmatpush.msra.mxu0 0.0
    %377 = vmatpush.msra.mxu0 %v300
    %378 = vmatpush.msra.mxu0 %v299
    %379 = vmatpush.msra.mxu0 %v298
    %380 = vmatpush.msra.mxu0 %v297
    %381 = vmatmul.f32.gmra.mxu0 %v349
    %v382 = vpop.f32.mrf.mxu0
    %v383 = vadd.f32 %v312, %v382
    %384 = vmatmul.f32.gmra.mxu0 %v351
    %v385 = vpop.f32.mrf.mxu0
    %v386 = vadd.f32 %v317, %v385
    %387 = vmatmul.f32.gmra.mxu0 %v353
    %v388 = vpop.f32.mrf.mxu0
    %v389 = vadd.f32 %v322, %v388
    %390 = vmatmul.f32.gmra.mxu0 %v355
    %v391 = vpop.f32.mrf.mxu0
    %v392 = vadd.f32 %v327, %v391
    %393 = vmatmul.f32.gmra.mxu0 %v357
    %v394 = vpop.f32.mrf.mxu0
    %v395 = vadd.f32 %v332, %v394
    %396 = vmatmul.f32.gmra.mxu0 %v359
    %v397 = vpop.f32.mrf.mxu0
    %v398 = vadd.f32 %v337, %v397
    %399 = vmatmul.f32.gmra.mxu0 %v361
    %v400 = vpop.f32.mrf.mxu0
    %v401 = vadd.f32 %v342, %v400
    %402 = vmatmul.f32.gmra.mxu0 %v363
    %v403 = vpop.f32.mrf.mxu0
    %v404 = vadd.f32 %v347, %v403
    %405 = vdwg.mxu0
    %v406 = vmul.f32 %v383, 0.01
    %v407 = vmul.f32 %v386, 0.01
    %v408 = vmul.f32 %v389, 0.01
    %v409 = vmul.f32 %v392, 0.01
    %v410 = vmul.f32 %v395, 0.01
    %v411 = vmul.f32 %v398, 0.01
    %v412 = vmul.f32 %v401, 0.01
    %v413 = vmul.f32 %v404, 0.01
    %v414 = vmax.f32 %v383, %v406
    %v415 = vmax.f32 %v386, %v407
    %v416 = vmax.f32 %v389, %v408
    %v417 = vmax.f32 %v392, %v409
    %v418 = vmax.f32 %v395, %v410
    %v419 = vmax.f32 %v398, %v411
    %v420 = vmax.f32 %v401, %v412
    %v421 = vmax.f32 %v404, %v413
    %v422 = vld [vmem:[#allocation2 + $0xa0] sm:$0x1]
    %424 = vset.pattern.permute.xlu0 64
    %425 = vperm.xlu0 %424, %v422
    %v426 = vpop.permute.xlu0 %425
    %vm428 = vcmask 523264
    %v429 = vsel %vm428, %v422, 0
    %431 = vmatpush.msra.mxu0 0.0
    %432 = vmatpush.msra.mxu0 0.0
    %433 = vmatpush.msra.mxu0 0.0
    %434 = vmatpush.msra.mxu0 0.0
    %435 = vmatpush.msra.mxu0 0.0
    %436 = vmatpush.msra.mxu0 0.0
    %437 = vmatpush.msra.mxu0 0.0
    %438 = vmatpush.msra.mxu0 0.0
    %439 = vmatpush.msra.mxu0 %v421
    %440 = vmatpush.msra.mxu0 %v420
    %441 = vmatpush.msra.mxu0 %v419
    %442 = vmatpush.msra.mxu0 %v418
    %443 = vmatpush.msra.mxu0 %v417
    %444 = vmatpush.msra.mxu0 %v416
    %445 = vmatpush.msra.mxu0 %v415
    %446 = vmatpush.msra.mxu0 %v414
    %447 = vmatmul.f32.gmra.mxu0 %v429
    %v448 = vpop.f32.mrf.mxu0
    %v449 = vadd.f32 %v426, %v448
    %450 = vdwg.mxu0
    %451 = vst [vmem:[#allocation5] sm:$0x1] %v449
    // Predicated region
    $region14: #{tpu_custom_call.1} parent=1 // pred_check
      _
    $region15: #{tpu_custom_call.1} parent=1 // pred_check_branch
      %453 = sbr.rel (0) target = $region17
    $region16: #{tpu_custom_call.1} parent=1 // pred_region
      %455 = vsyncadd [#allocation4], 0
      %s457 = sshll.u32 [#allocation5], 4
      %s458 = int_to_ptr.vmem [resolvable:$true] %s457
      %s459 = sshll.u32 %s2, 4
      %s460 = int_to_ptr.hbm [resolvable:$true] %s459
      %462 = dma.vmem_to_hbm [thread:$0]  %s458, 16, %s460, [#allocation4]
    $region17: #{tpu_custom_call.1} parent=1 // pred_fallthru
      _
    // Predicated region
    $region18: #{tpu_custom_call.1} parent=1 // pred_check
      _
    $region19: #{tpu_custom_call.1} parent=1 // pred_check_branch
      %464 = sbr.rel (0) target = $region21
    $region20: #{tpu_custom_call.1} parent=1 // pred_region
      %466 = dma.done [#allocation4], 16
    $region21: #{tpu_custom_call.1} parent=1 // pred_fallthru
      _
    %467 = vsyncpa [#allocation3], 1
    %468 = vsyncpa [#allocation4], 1

</llo_original>
